<compile_context>
chip_gen: v7x
topology: tpu7x:2x2x1
jax: 0.10.0
libtpu: 0.0.40
codegen_flags: <defaults>
</compile_context>

<pallas_src>
import functools

import jax
import jax.numpy as jnp
from jax import lax
from jax.experimental import pallas as pl
from jax.experimental.pallas import tpu as pltpu

BN_EPS = 1e-5


# --------------------------------------------------------------------------- #
# Kernels (one feature-column tile per grid step; full batch per tile)
# --------------------------------------------------------------------------- #
def linear_bn_relu_kernel(x_ref, w_ref, vec_ref, out_ref, *, g_row, b_row):
    """Linear (bias dropped) -> BatchNorm1d (training stats) -> ReLU.

    x_ref:   [B, K]  bf16  full batch (BN stats need every row)
    w_ref:   [K, TN] bf16  weight column tile
    vec_ref: [8, TN] f32   packed per-feature vectors (gamma/beta rows)
    out_ref: [B, TN] bf16  feeds the next layer's matmul directly
    """
    h = jnp.dot(x_ref[...], w_ref[...], preferred_element_type=jnp.float32)
    g = vec_ref[g_row:g_row + 1, :]
    be = vec_ref[b_row:b_row + 1, :]
    # Two-pass biased variance in f32 (BatchNorm training-mode normalization).
    mu = jnp.mean(h, axis=0, keepdims=True)
    d = h - mu
    var = jnp.mean(d * d, axis=0, keepdims=True)
    s = g * lax.rsqrt(var + BN_EPS)          # folded affine scale (EUP rsqrt)
    out_ref[...] = jnp.maximum(h * s + (be - mu * s), 0.0).astype(out_ref.dtype)


def linear_bias_kernel(x_ref, w_ref, vec_ref, out_ref, *, b_row):
    """Final Linear with bias (no BN after it, so the bias must be kept)."""
    h = jnp.dot(x_ref[...], w_ref[...], preferred_element_type=jnp.float32)
    out_ref[...] = (h + vec_ref[b_row:b_row + 1, :]).astype(out_ref.dtype)


# --------------------------------------------------------------------------- #
# Per-layer pallas_call wrapper
# --------------------------------------------------------------------------- #
def _pick_tile_n(pp):
    # 256-multiples feed the 2x256^2 MXU on v6e/v7x; 128 is the v5e / demo floor.
    for t in (512, 256, 128):
        if pp % t == 0:
            return t
    return pp


def _layer(x, w, vec, kernel, out_dtype):
    b, k = x.shape
    k_w, pp = w.shape
    assert k == k_w
    tn = _pick_tile_n(pp)

    # Realistic VMEM residency: x slab + double-buffered weight / vec / out
    # tiles + the f32 intermediate, plus ~25% headroom.  Never request the full
    # 64 MiB of v7x (leave compiler scratch room).
    bytes_needed = (
        2 * b * k * x.dtype.itemsize                       # x slab (buffered)
        + 2 * k * tn * w.dtype.itemsize                    # weight column tile
        + 2 * 8 * tn * 4                                   # packed vectors
        + 2 * b * tn * jnp.dtype(out_dtype).itemsize       # output tile
        + b * tn * 4                                       # f32 h inside kernel
    )
    vmem_limit = int(min(max(bytes_needed * 5 // 4, 4 << 20), 48 << 20))

    # TODO(synk): if weight-column DMA is still exposed at production shapes,
    # sweep pipeline depth via pipeline_mode=pl.Buffered(3) on the weight spec.
    return pl.pallas_call(
        kernel,
        out_shape=jax.ShapeDtypeStruct((b, pp), out_dtype),
        grid=(pp // tn,),
        in_specs=[
            pl.BlockSpec((b, k), lambda j: (0, 0)),    # full batch, full K
            pl.BlockSpec((k, tn), lambda j: (0, j)),   # weight column tile
            pl.BlockSpec((8, tn), lambda j: (0, j)),   # per-feature vec tile
        ],
        out_specs=pl.BlockSpec((b, tn), lambda j: (0, j)),
        compiler_params=pltpu.CompilerParams(
            dimension_semantics=("parallel",),         # shard tiles across TCs
            vmem_limit_bytes=vmem_limit,
        ),
    )(x, w, vec)


def projector(x, packed):
    """x: [B, E] float32 (E == packed['E']).  Returns [B, P] float32."""
    p, pp = packed["P"], packed["Pp"]
    # One tiny cast; all hidden activations stay bf16 kernel-to-kernel.
    h = x.astype(jnp.bfloat16)
    h = _layer(h, packed["w1"], packed["vec"],
               functools.partial(linear_bn_relu_kernel, g_row=0, b_row=1),
               jnp.bfloat16)
    h = _layer(h, packed["w2"], packed["vec"],
               functools.partial(linear_bn_relu_kernel, g_row=2, b_row=3),
               jnp.bfloat16)
    out = _layer(h, packed["w3"], packed["vec"],
                 functools.partial(linear_bias_kernel, b_row=4),
                 jnp.float32)
    # TODO(synk): keep P a multiple of 128 in production so this slice (a full
    # HBM copy of the output) disappears.
    return out[:, :p] if pp != p else out


# --------------------------------------------------------------------------- #
# Parameter packing / init / reference
# --------------------------------------------------------------------------- #
def _round_up(n, m):
    return ((n + m - 1) // m) * m


def pack_params(params):
    """Pad the feature dim P to a multiple of 128 (lane-dense), store Linear
    weights as bf16 (MXU operands), and pack the surviving per-feature f32
    vectors into one [8, Pp] slab: rows 0=g1, 1=be1, 2=g2, 3=be2, 4=b3.
    b1/b2 are dropped on purpose: training-mode BatchNorm subtracts the batch
    mean right after, so a constant per-feature bias cancels exactly."""
    e, p = params["w1"].shape
    pp = max(_round_up(p, 128), 128)

    def pad_w(w, rows, cols):
        w = jnp.pad(w, ((0, rows - w.shape[0]), (0, cols - w.shape[1])))
        return w.astype(jnp.bfloat16)

    def row(v):
        v = v.reshape(1, -1).astype(jnp.float32)
        return jnp.pad(v, ((0, 0), (0, pp - v.shape[1])))

    vec = jnp.concatenate(
        [row(params["g1"]), row(params["be1"]),
         row(params["g2"]), row(params["be2"]),
         row(params["b3"]),
         jnp.zeros((3, pp), jnp.float32)],   # pad to 8 sublanes
        axis=0)

    return {
        "w1": pad_w(params["w1"], e, pp),    # E left unpadded: full-extent block
        "w2": pad_w(params["w2"], pp, pp),
        "w3": pad_w(params["w3"], pp, pp),
        "vec": vec,
        "E": e, "P": p, "Pp": pp,
    }


def init_params(key, encoded_dim, proj_dim):
    """PyTorch-shaped params; Linear weights kept pre-transposed as [in, out]."""
    ks = jax.random.split(key, 6)
    s1 = 1.0 / jnp.sqrt(encoded_dim)
    s2 = 1.0 / jnp.sqrt(proj_dim)
    return {
        "w1": jax.random.uniform(ks[0], (encoded_dim, proj_dim), jnp.float32, -s1, s1),
        "b1": jax.random.uniform(ks[1], (1, proj_dim), jnp.float32, -s1, s1),
        "g1": jnp.ones((1, proj_dim), jnp.float32),
        "be1": jnp.zeros((1, proj_dim), jnp.float32),
        "w2": jax.random.uniform(ks[2], (proj_dim, proj_dim), jnp.float32, -s2, s2),
        "b2": jax.random.uniform(ks[3], (1, proj_dim), jnp.float32, -s2, s2),
        "g2": jnp.ones((1, proj_dim), jnp.float32),
        "be2": jnp.zeros((1, proj_dim), jnp.float32),
        "w3": jax.random.uniform(ks[4], (proj_dim, proj_dim), jnp.float32, -s2, s2),
        "b3": jax.random.uniform(ks[5], (1, proj_dim), jnp.float32, -s2, s2),
    }


def projector_ref(x, p):
    """Pure-JAX f32 reference (mirrors PyTorch training-mode forward, incl. b1/b2)."""
    def bn(h, g, be):
        mu = jnp.mean(h, axis=0, keepdims=True)
        var = jnp.mean((h - mu) ** 2, axis=0, keepdims=True)
        return (h - mu) / jnp.sqrt(var + BN_EPS) * g + be

    h = x @ p["w1"] + p["b1"]
    h = jnp.maximum(bn(h, p["g1"], p["be1"]), 0.0)
    h = h @ p["w2"] + p["b2"]
    h = jnp.maximum(bn(h, p["g2"], p["be2"]), 0.0)
    return h @ p["w3"] + p["b3"]


# --------------------------------------------------------------------------- #
# Demo
# --------------------------------------------------------------------------- #
if __name__ == "__main__":
    ENCODED_DIM = 32   # hp.encoded_dim (synthetic)
    PROJ_DIM = 64      # hp.projected_dim (synthetic)
    BATCH = 8          # NB: at B=8 the kernel is pure overhead; tune only at B>=256

    key = jax.random.PRNGKey(0)
    kx, kp = jax.random.split(key)
    x = jax.random.normal(kx, (BATCH, ENCODED_DIM), jnp.float32)
    params = init_params(kp, ENCODED_DIM, PROJ_DIM)

    packed = pack_params(params)
    out = jax.block_until_ready(projector(x, packed))

    ref = projector_ref(x, params)
    assert out.shape == (BATCH, PROJ_DIM)
    # bf16 MXU operands (f32 accumulate / f32 BN) give ~1e-2-scale deviations
    # from the pure-f32 reference; tolerance reflects that, structural bugs are O(1).
    err = float(jnp.max(jnp.abs(out - ref)))
    assert err < 1e-1, f"mismatch vs reference: max abs err = {err}"

    print("KERNEL_OK")
</pallas_src>

<mosaic_0001>
module attributes {stable_mosaic.version = 11 : i64} {
  func.func @linear_bn_relu_kernel(%arg0: i32, %arg1: memref<8x32xbf16, #tpu.memory_space<vmem>>, %arg2: memref<32x128xbf16, #tpu.memory_space<vmem>>, %arg3: memref<8x128xf32, #tpu.memory_space<vmem>>, %arg4: memref<8x128xbf16, #tpu.memory_space<vmem>>) attributes {dimension_semantics = [#tpu.dimension_semantics<parallel>], iteration_bounds = array<i64: 1>, scalar_prefetch = 0 : i64, scratch_operands = 0 : i64, tpu.core_type = #tpu.core_type<tc>, window_params = [{pipeline_mode = #tpu.pipeline_mode<synchronous>, transform_indices = @transform_0, window_bounds = array<i64: 8, 32>}, {transform_indices = @transform_1, window_bounds = array<i64: 32, 128>}, {transform_indices = @transform_2, window_bounds = array<i64: 8, 128>}, {transform_indices = @transform_3, window_bounds = array<i64: 8, 128>}]} {
    %c0 = arith.constant 0 : index
    %c0_0 = arith.constant 0 : index
    %0 = vector.load %arg1[%c0, %c0_0] : memref<8x32xbf16, #tpu.memory_space<vmem>>, vector<8x32xbf16>
    %c0_1 = arith.constant 0 : index
    %c0_2 = arith.constant 0 : index
    %1 = vector.load %arg2[%c0_1, %c0_2] : memref<32x128xbf16, #tpu.memory_space<vmem>>, vector<32x128xbf16>
    %cst = arith.constant dense<0.000000e+00> : vector<8x128xf32>
    %2 = tpu.matmul %0, %1, %cst {dimension_numbers = #tpu.dot_dimension_numbers<[1], [0], [0], [1], [0, 0, 1, 1], [], []>} : vector<8x32xbf16>, vector<32x128xbf16>, vector<8x128xf32> -> vector<8x128xf32>
    %c0_3 = arith.constant 0 : index
    %c0_4 = arith.constant 0 : index
    %3 = vector.load %arg3[%c0_3, %c0_4] : memref<8x128xf32, #tpu.memory_space<vmem>>, vector<1x128xf32>
    %c1 = arith.constant 1 : index
    %c0_5 = arith.constant 0 : index
    %4 = vector.load %arg3[%c1, %c0_5] : memref<8x128xf32, #tpu.memory_space<vmem>>, vector<1x128xf32>
    %cst_6 = arith.constant dense<0.000000e+00> : vector<128xf32>
    %5 = vector.multi_reduction <add>, %2, %cst_6 [0] : vector<8x128xf32> to vector<128xf32>
    %6 = vector.shape_cast %5 : vector<128xf32> to vector<1x128xf32>
    %cst_7 = arith.constant 8.000000e+00 : f32
    %7 = vector.broadcast %cst_7 : f32 to vector<1x128xf32>
    %8 = arith.divf %6, %7 : vector<1x128xf32>
    %9 = vector.broadcast %8 : vector<1x128xf32> to vector<8x128xf32>
    %10 = arith.subf %2, %9 : vector<8x128xf32>
    %11 = arith.mulf %10, %10 : vector<8x128xf32>
    %cst_8 = arith.constant dense<0.000000e+00> : vector<128xf32>
    %12 = vector.multi_reduction <add>, %11, %cst_8 [0] : vector<8x128xf32> to vector<128xf32>
    %13 = vector.shape_cast %12 : vector<128xf32> to vector<1x128xf32>
    %cst_9 = arith.constant 8.000000e+00 : f32
    %14 = vector.broadcast %cst_9 : f32 to vector<1x128xf32>
    %15 = arith.divf %13, %14 : vector<1x128xf32>
    %cst_10 = arith.constant 9.99999974E-6 : f32
    %16 = vector.broadcast %cst_10 : f32 to vector<1x128xf32>
    %17 = arith.addf %15, %16 : vector<1x128xf32>
    %18 = math.rsqrt %17 : vector<1x128xf32>
    %19 = arith.mulf %3, %18 : vector<1x128xf32>
    %20 = vector.broadcast %19 : vector<1x128xf32> to vector<8x128xf32>
    %21 = arith.mulf %2, %20 : vector<8x128xf32>
    %22 = arith.mulf %8, %19 : vector<1x128xf32>
    %23 = arith.subf %4, %22 : vector<1x128xf32>
    %24 = vector.broadcast %23 : vector<1x128xf32> to vector<8x128xf32>
    %25 = arith.addf %21, %24 : vector<8x128xf32>
    %cst_11 = arith.constant 0.000000e+00 : f32
    %26 = vector.broadcast %cst_11 : f32 to vector<8x128xf32>
    %27 = arith.maximumf %25, %26 : vector<8x128xf32>
    %28 = arith.truncf %27 : vector<8x128xf32> to vector<8x128xbf16>
    %c0_12 = arith.constant 0 : index
    %c0_13 = arith.constant 0 : index
    %29 = vector.load %arg4[%c0_12, %c0_13] : memref<8x128xbf16, #tpu.memory_space<vmem>>, vector<8x128xbf16>
    tpu.vector_store %arg4[%c0_12, %c0_13], %28 {strides = array<i32>} : memref<8x128xbf16, #tpu.memory_space<vmem>>, vector<8x128xbf16>,
    return
  }
  func.func @transform_0(%arg0: i32) -> (i32, i32) {
    %c0_i32 = arith.constant 0 : i32
    %c0_i32_0 = arith.constant 0 : i32
    %c0_i32_1 = arith.constant 0 : i32
    return %c0_i32, %c0_i32_0 : i32, i32
  }
  func.func @transform_1(%arg0: i32) -> (i32, i32) {
    %c0_i32 = arith.constant 0 : i32
    %c0_i32_0 = arith.constant 0 : i32
    return %c0_i32, %arg0 : i32, i32
  }
  func.func @transform_2(%arg0: i32) -> (i32, i32) {
    %c0_i32 = arith.constant 0 : i32
    %c0_i32_0 = arith.constant 0 : i32
    return %c0_i32, %arg0 : i32, i32
  }
  func.func @transform_3(%arg0: i32) -> (i32, i32) {
    %c0_i32 = arith.constant 0 : i32
    %c0_i32_0 = arith.constant 0 : i32
    return %c0_i32, %arg0 : i32, i32
  }
}

</mosaic_0001>

<llo_original>
// kernel: tpu_custom_call.1
$region0: #{tpu_custom_call.1}
  #allocation0 [shape = 'u32[]', space=smem, size = 0x4, offset = 0x4, fixed_abs, tag = 'smem constant byte address 0x4 - core index']
  #allocation1 [shape = 'u32[144,128]{1,0:T(1,128)}', space=vmem, size = 0x12000, scoped, tag = 'internal scratch']
  %s0 = inlined_call_operand.hbm [shape: bf16[8,32], index: 0, kind: input, shape index: {}]
  %s1 = inlined_call_operand.hbm [shape: bf16[32,128], index: 1, kind: input, shape index: {}]
  %s2 = inlined_call_operand.hbm [shape: f32[8,128], index: 2, kind: input, shape index: {}]
  %s3 = inlined_call_operand.hbm [shape: bf16[8,128], index: 3, kind: output, shape index: {}]
  %s4 = sld [smem:[#allocation0]]
  $region34: #{tpu_custom_call.1} parent=0
    _
  %s6 = ssub.s32 1, %s4
  %s7 = scalar_select 0, %s6, %s4
  $region1: #{tpu_custom_call.1} parent=0
    #allocation2 [shape = 'u8[2048]{0}', space=vmem, size = 0x800, scoped, tag = 'input window, operand 0, single buffered']
    #allocation3 [shape = 's32[1]{0}', space=sflag, size = 0x4, scoped, tag = 'scoped memory for tpu_custom_call.1']
    #allocation4 [shape = 's32[1]{0}', space=sflag, size = 0x4, scoped, tag = 'scoped memory for tpu_custom_call.1']
    #allocation5 [shape = 'u8[8192]{0}', space=vmem, size = 0x2000, scoped, tag = 'input window, operand 1, single buffered']
    #allocation6 [shape = 's32[1]{0}', space=sflag, size = 0x4, scoped, tag = 'scoped memory for tpu_custom_call.1']
    #allocation7 [shape = 'u8[4096]{0}', space=vmem, size = 0x1000, scoped, tag = 'input window, operand 2, single buffered']
    #allocation8 [shape = 'u8[2048]{0}', space=vmem, size = 0x800, scoped, tag = 'output window, operand 0, single buffered']
    %8 = vsyncpa [#allocation3], 0
    %9 = vsyncpa [#allocation6], 0
    %10 = vsyncpa [#allocation4], 0
    // Predicated region
    $region2: #{tpu_custom_call.1} parent=1 // pred_check
      _
    $region3: #{tpu_custom_call.1} parent=1 // pred_check_branch
      %12 = sbr.rel (0) target = $region5
    $region4: #{tpu_custom_call.1} parent=1 // pred_region
      %s14 = ssub.s32 64, 64
      %15 = vsyncadd [#allocation3], %s14
      %s17 = sshll.u32 [#allocation2], 4
      %s18 = int_to_ptr.vmem [resolvable:$true] %s17
      %20 = dma.hbm_to_vmem [thread:$0]  %s0, 64, %s18, [#allocation3]
    $region5: #{tpu_custom_call.1} parent=1 // pred_fallthru
      _
    // Predicated region
    $region6: #{tpu_custom_call.1} parent=1 // pred_check
      _
    $region7: #{tpu_custom_call.1} parent=1 // pred_check_branch
      %22 = sbr.rel (0) target = $region9
    $region8: #{tpu_custom_call.1} parent=1 // pred_region
      %s24 = ssub.s32 256, 256
      %25 = vsyncadd [#allocation6], %s24
      %s26 = sshll.u32 [#allocation5], 4
      %s27 = int_to_ptr.vmem [resolvable:$true] %s26
      %32 = dma.hbm_to_vmem [thread:$0]  %s1, 256, %s27, [#allocation6], 64, 64, 4
    $region9: #{tpu_custom_call.1} parent=1 // pred_fallthru
      _
    // Predicated region
    $region10: #{tpu_custom_call.1} parent=1 // pred_check
      _
    $region11: #{tpu_custom_call.1} parent=1 // pred_check_branch
      %34 = sbr.rel (0) target = $region13
    $region12: #{tpu_custom_call.1} parent=1 // pred_region
      %s36 = ssub.s32 128, 128
      %37 = vsyncadd [#allocation6], %s36
      %s39 = sshll.u32 [#allocation7], 4
      %s40 = int_to_ptr.vmem [resolvable:$true] %s39
      %42 = dma.hbm_to_vmem [thread:$0]  %s2, 128, %s40, [#allocation6]
    $region13: #{tpu_custom_call.1} parent=1 // pred_fallthru
      _
    // Predicated region
    $region14: #{tpu_custom_call.1} parent=1 // pred_check
      _
    $region15: #{tpu_custom_call.1} parent=1 // pred_check_branch
      %44 = sbr.rel (0) target = $region17
    $region16: #{tpu_custom_call.1} parent=1 // pred_region
      %45 = dma.done [#allocation3], 64
    $region17: #{tpu_custom_call.1} parent=1 // pred_fallthru
      _
    // Predicated region
    $region18: #{tpu_custom_call.1} parent=1 // pred_check
      _
    $region19: #{tpu_custom_call.1} parent=1 // pred_check_branch
      %47 = sbr.rel (0) target = $region21
    $region20: #{tpu_custom_call.1} parent=1 // pred_region
      %48 = dma.done [#allocation6], 256
    $region21: #{tpu_custom_call.1} parent=1 // pred_fallthru
      _
    // Predicated region
    $region22: #{tpu_custom_call.1} parent=1 // pred_check
      _
    $region23: #{tpu_custom_call.1} parent=1 // pred_check_branch
      %50 = sbr.rel (0) target = $region25
    $region24: #{tpu_custom_call.1} parent=1 // pred_region
      %51 = dma.done [#allocation6], 128
    $region25: #{tpu_custom_call.1} parent=1 // pred_fallthru
      _
    %v53 = vld [vmem:[#allocation2] sm:$0xf]
    %v54 = vld [vmem:[#allocation5] sm:$0xf]
    %v55 = vld [vmem:[#allocation5 + $0x4] sm:$0xf]
    %v56 = vld [vmem:[#allocation5 + $0x8] sm:$0xf]
    %v57 = vld [vmem:[#allocation5 + $0xc] sm:$0xf]
    %v62 = vunpack.c.l.b16 %v54
    %v63 = vunpack.c.l.b16 %v55
    %v64 = vunpack.c.l.b16 %v56
    %v65 = vunpack.c.l.b16 %v57
    %v66 = vpack.c.b16 %v63, %v62
    %v67 = vpack.c.b16 %v65, %v64
    %vm70 = vcmask 261120
    %v72 = vsel %vm70, %v53, 0
    %74 = vmatprep.subr.bf16.mxu0 0
    %75 = vmatpush1.bf16.msra.mxu0 %v66
    %76 = vmatprep.subr.bf16.mxu0 0
    %77 = vmatpush1.bf16.msra.mxu0 %v67
    %78 = vmatprep.subr.bf16.mxu0 0
    %79 = vmatpush1.bf16.msra.mxu0 0
    %80 = vmatprep.subr.bf16.mxu0 0
    %81 = vmatpush1.bf16.msra.mxu0 0
    %82 = vmatprep.subr.bf16.mxu0 0
    %83 = vmatpush1.bf16.msra.mxu0 0
    %84 = vmatprep.subr.bf16.mxu0 0
    %85 = vmatpush1.bf16.msra.mxu0 0
    %86 = vmatprep.subr.bf16.mxu0 0
    %87 = vmatpush1.bf16.msra.mxu0 0
    %88 = vmatprep.subr.bf16.mxu0 0
    %89 = vmatpush1.bf16.msra.mxu0 0
    %90 = vmatprep.subr.bf16.mxu0 0
    %91 = vmatpush1.bf16.msra.mxu0 0
    %92 = vmatprep.subr.bf16.mxu0 0
    %93 = vmatpush1.bf16.msra.mxu0 0
    %94 = vmatprep.subr.bf16.mxu0 0
    %95 = vmatpush1.bf16.msra.mxu0 0
    %96 = vmatprep.subr.bf16.mxu0 0
    %97 = vmatpush1.bf16.msra.mxu0 0
    %98 = vmatprep.subr.bf16.mxu0 0
    %99 = vmatpush1.bf16.msra.mxu0 0
    %100 = vmatprep.subr.bf16.mxu0 0
    %101 = vmatpush1.bf16.msra.mxu0 0
    %102 = vmatprep.subr.bf16.mxu0 0
    %103 = vmatpush1.bf16.msra.mxu0 0
    %104 = vmatprep.subr.bf16.mxu0 0
    %105 = vmatpush1.bf16.msra.mxu0 0
    %106 = vmatprep.mubr.bf16.mxu0 0
    %107 = vmatmul.mubr.bf16.gmra.mrb[0].mxu0 %v72
    %v108 = vpop.f32.mrb[0].mxu0
    %v109 = vadd.f32 0.0, %v108
    %v110 = vpop.f32.mrb[0].mxu0
    %v111 = vpop.f32.mrb[0].mxu0
    %v112 = vpop.f32.mrb[0].mxu0
    %113 = vdwg.mxu0
    %v114 = vld [vmem:[#allocation7] sm:$0x1]
    %v115 = vld [vmem:[#allocation7 + $0x1] sm:$0x1]
    %v116 = vrot.slane %v109, 4
    %v117 = vadd.f32 %v109, %v116
    %v118 = vrot.slane %v117, 2
    %v119 = vadd.f32 %v117, %v118
    %v120 = vrot.slane %v119, 1
    %v121 = vadd.f32 %v119, %v120
    %v122 = vrcp.pop 8.0
    %v123 = vmul.f32 %v121, %v122
    %v124 = vsub.f32 %v109, %v123
    %v125 = vmul.f32 %v124, %v124
    %v126 = vrot.slane %v125, 4
    %v127 = vadd.f32 %v125, %v126
    %v128 = vrot.slane %v127, 2
    %v129 = vadd.f32 %v127, %v128
    %v130 = vrot.slane %v129, 1
    %v131 = vadd.f32 %v129, %v130
    %v132 = vmul.f32 %v131, %v122
    %v133 = vadd.f32 %v132, 1e-05
    %v134 = vrsqrt.pop %v133
    %v135 = vmul.f32 %v114, %v134
    %v136 = vlaneseq
    %v137 = vshrl.u32 %v136, 7
    %v138 = vsub.s32 0, %v137
    %v139 = vrot.slane %v135, %v138
    %v140 = vmul.f32 %v109, %v139
    %v141 = vmul.f32 %v123, %v135
    %v142 = vsub.f32 %v115, %v141
    %v143 = vlaneseq
    %v144 = vshrl.u32 %v143, 7
    %v145 = vsub.s32 0, %v144
    %v146 = vrot.slane %v142, %v145
    %v147 = vadd.f32 %v140, %v146
    %v148 = vmax.f32 %v147, 0.0
    %v149 = vpack.c.bf16 %v148, %v148
    %150 = vst [vmem:[#allocation8] sm:$0xf] %v149
    // Predicated region
    $region26: #{tpu_custom_call.1} parent=1 // pred_check
      _
    $region27: #{tpu_custom_call.1} parent=1 // pred_check_branch
      %152 = sbr.rel (0) target = $region29
    $region28: #{tpu_custom_call.1} parent=1 // pred_region
      %s154 = ssub.s32 64, 64
      %155 = vsyncadd [#allocation4], %s154
      %s157 = sshll.u32 [#allocation8], 4
      %s158 = int_to_ptr.vmem [resolvable:$true] %s157
      %160 = dma.vmem_to_hbm [thread:$0]  %s158, 64, %s3, [#allocation4]
    $region29: #{tpu_custom_call.1} parent=1 // pred_fallthru
      _
    // Predicated region
    $region30: #{tpu_custom_call.1} parent=1 // pred_check
      _
    $region31: #{tpu_custom_call.1} parent=1 // pred_check_branch
      %162 = sbr.rel (0) target = $region33
    $region32: #{tpu_custom_call.1} parent=1 // pred_region
      %163 = dma.done [#allocation4], 64
    $region33: #{tpu_custom_call.1} parent=1 // pred_fallthru
      _
    %164 = vsyncpa [#allocation3], 1
    %165 = vsyncpa [#allocation6], 1
    %166 = vsyncpa [#allocation4], 1

</llo_original>
